<compile_context>
chip_gen: v7x
topology: tpu7x:2x2x1
jax: 0.10.0
libtpu: 0.0.40
codegen_flags: <defaults>
</compile_context>

<pallas_src>
import functools

import jax
import jax.numpy as jnp
from jax.experimental import pallas as pl
from jax.experimental.pallas import tpu as pltpu

_MIB = 1024 * 1024


def _ce_kernel(logits_ref, labels_ref, loss_ref, acc_ref, *, n_total, semi):
    """One grid step processes a (C, tile_n) slab of logits (class x sample).

    acc_ref  : (1, tile_n) f32, lane-dense running per-sample loss accumulator.
    loss_ref : (1, 1, 1) f32, per-partition partial mean, written only in the epilogue.
    """
    p = pl.program_id(0)          # partition ("parallel"/CORE_PARALLEL) axis
    i = pl.program_id(1)          # sample-block reduction ("arbitrary") axis

    @pl.when(i == 0)
    def _():
        acc_ref[...] = jnp.zeros_like(acc_ref)

    logits = logits_ref[...].astype(jnp.float32)              # (C, tn)
    c, tn = logits.shape
    fused = labels_ref[...]                                   # (1, tn) int32, -1 == unlabeled

    if semi:
        mask = (fused >= 0).astype(jnp.float32)               # (1, tn)
        labels = jnp.maximum(fused, 0)                        # l * label
        logits = logits * mask                                # L * Y_pred, in-register
    else:
        labels = fused

    # Global sample index of each lane; neutralizes the ragged tail block and the
    # duplicated (clamped) trailing block of the second partition.
    block = p * pl.num_programs(1) + i
    col = jax.lax.broadcasted_iota(jnp.int32, (1, tn), 1) + block * tn
    valid = col < n_total                                     # (1, tn) bool

    # Numerically stable per-lane log-sum-exp over the class (sublane) axis.
    m = jnp.max(logits, axis=0, keepdims=True)                # (1, tn)
    lse = m + jnp.log(jnp.sum(jnp.exp(logits - m), axis=0, keepdims=True))

    # Gather logit at the label index via a one-hot compare (no dynamic gather on TPU).
    row = jax.lax.broadcasted_iota(jnp.int32, (c, tn), 0)
    true_logit = jnp.sum(jnp.where(row == labels, logits, 0.0),
                         axis=0, keepdims=True)               # (1, tn)

    # Select gate contains any NaN/Inf from garbage padding lanes (per-lane isolation).
    acc_ref[...] += jnp.where(valid, lse - true_logit, 0.0)

    @pl.when(i == pl.num_programs(1) - 1)
    def _():
        partial = jnp.sum(acc_ref[...]) * jnp.float32(1.0 / n_total)
        loss_ref[...] = jnp.full((1, 1, 1), partial, dtype=jnp.float32)


def _device_profile():
    """Generation-aware per-buffer logits-tile budget + scoped-VMEM cap."""
    kind = ""
    try:
        kind = jax.devices()[0].device_kind.lower()
    except Exception:
        pass
    phys_vmem = None
    try:
        phys_vmem = int(pltpu.get_tpu_info().vmem_capacity_bytes)
    except Exception:
        phys_vmem = None

    if "7" in kind:        # v7x: 64 MiB VMEM per TC, ~3.2 TB/s HBM per TC
        tile_budget, vmem_cap, is_v7x = 7 * _MIB, 44 * _MIB, True
    elif "v6" in kind:     # v6e: 128 MiB VMEM, ~1.4 TB/s HBM
        tile_budget, vmem_cap, is_v7x = 10 * _MIB, 80 * _MIB, False
    elif "v5" in kind:     # v5e: 128 MiB physical (16 MiB default scoped -> override)
        tile_budget, vmem_cap, is_v7x = 8 * _MIB, 48 * _MIB, False
    else:                  # unknown / older generation: conservative
        tile_budget, vmem_cap, is_v7x = 4 * _MIB, 32 * _MIB, False

    if phys_vmem is not None:
        vmem_cap = min(vmem_cap, max(phys_vmem // 2, phys_vmem - 16 * _MIB))
    return {"tile_budget": tile_budget, "vmem_cap": vmem_cap, "is_v7x": is_v7x}


def _padded_rows(c, itemsize):
    """Sublane-padded row count of a (C, *) VMEM block for the given dtype width."""
    packing = max(1, 4 // max(1, itemsize))   # f32 -> 1, bf16 -> 2, int8/fp8 -> 4
    mult = 8 * packing
    return ((c + mult - 1) // mult) * mult


def _pick_tile_n(n, c, itemsize, budget, requested=None):
    """tile_n is either the full N, or a multiple of 128 capped by the per-buffer budget."""
    rows = _padded_rows(c, itemsize)
    if requested is None:
        tile = max(budget // (rows * itemsize), 128)
    else:
        tile = max(int(requested), 128)
    if tile >= n:
        return n
    return max((tile // 128) * 128, 128)


def _vmem_footprint(c, tn, itemsize):
    """Sublane-padding-aware VMEM footprint: double-buffered inputs + acc scratch."""
    rows = _padded_rows(c, itemsize)
    logits = 2 * rows * tn * itemsize     # double-buffered (C, tn) logits slab
    labels = 2 * 8 * tn * 4               # double-buffered fused int32 label row (8-sublane pad)
    acc = 8 * tn * 4                      # (1, tn) f32 accumulator scratch (8-sublane pad)
    return logits + labels + acc


def _cross_entropy_pallas(logits_cn, fused_labels, *, semi, tile_n=None):
    """logits_cn: (C, N) float; fused_labels: (N,) int (-1 == unlabeled when semi).

    Returns the scalar mean cross-entropy loss.
    """
    c, n = logits_cn.shape
    itemsize = jnp.dtype(logits_cn.dtype).itemsize
    prof = _device_profile()

    tn = _pick_tile_n(n, c, itemsize, prof["tile_budget"], tile_n)
    foot = _vmem_footprint(c, tn, itemsize)
    if foot > prof["vmem_cap"]:
        # TODO(synk): for vocab-scale C (a single (C, 128) slab exceeding scoped VMEM),
        # add a class-dimension grid axis with an online-softmax (running max / denom).
        raise NotImplementedError(
            f"C={c} too large for a single (C, {tn}) VMEM block on this device")
    vmem_limit = int(min(prof["vmem_cap"], max(foot + 8 * _MIB, 32 * _MIB)))

    labels2d = fused_labels.astype(jnp.int32).reshape(1, n)   # lane-dense fused row

    n_blocks = pl.cdiv(n, tn)
    # 2-way sample-block split via cdiv: odd block counts still split; the duplicated
    # trailing block of partition 1 is fully discarded by the in-kernel `valid` mask.
    num_parts = 2 if n_blocks >= 2 else 1
    steps = pl.cdiv(n_blocks, num_parts)
    max_block = n_blocks - 1

    def sample_block_map(p, i):
        return (0, jnp.minimum(p * steps + i, max_block))

    if prof["is_v7x"] and num_parts == 2:
        part_sem = getattr(pltpu, "CORE_PARALLEL", "parallel")  # shard across both TCs
    else:
        part_sem = "parallel"

    out = pl.pallas_call(
        functools.partial(_ce_kernel, n_total=n, semi=semi),
        out_shape=jax.ShapeDtypeStruct((num_parts, 1, 1), jnp.float32),
        grid_spec=pltpu.PrefetchScalarGridSpec(
            num_scalar_prefetch=0,
            grid=(num_parts, steps),
            in_specs=[
                pl.BlockSpec((c, tn), sample_block_map),   # logits, native (C, N) layout
                pl.BlockSpec((1, tn), sample_block_map),   # fused labels, lane-dense row
            ],
            out_specs=pl.BlockSpec((1, 1, 1), lambda p, i: (p, 0, 0)),
            scratch_shapes=[pltpu.VMEM((1, tn), jnp.float32)],
        ),
        compiler_params=pltpu.CompilerParams(
            dimension_semantics=(part_sem, "arbitrary"),
            vmem_limit_bytes=vmem_limit),
    )(logits_cn, labels2d)
    # Partials are already scaled by 1/N; summing them yields the mean.
    return jnp.sum(out)


def classification_loss_cross_entropy(Y_pred, label, L=None, *, tile_n=None):
    """Mirrors ClassificationLossCrossEntropy.forward.

    Y_pred: (C, N) float, label: (N,) int, L: optional (C, N) 0/1 indicator
    (all-zero / all-one columns).
    """
    label_i32 = label.astype(jnp.int32)
    if L is None:
        return _cross_entropy_pallas(Y_pred, label_i32, semi=False, tile_n=tile_n)
    labeled = L[0, :].astype(jnp.float32) > 0.5
    fused = jnp.where(labeled, label_i32, jnp.int32(-1))      # single aux row in HBM
    return _cross_entropy_pallas(Y_pred, fused, semi=True, tile_n=tile_n)


def _reference_loss(Y_pred, label, L=None):
    if L is None:
        logits = jnp.transpose(Y_pred).astype(jnp.float32)
        labels = label.astype(jnp.int32)
    else:
        logits = jnp.transpose(L * Y_pred).astype(jnp.float32)
        labels = L[0, :].astype(jnp.int32) * label.astype(jnp.int32)
    lse = jax.nn.logsumexp(logits, axis=-1)
    true = jnp.take_along_axis(logits, labels[:, None], axis=-1)[:, 0]
    return jnp.mean(lse - true)


if __name__ == "__main__":
    key = jax.random.PRNGKey(0)
    C = 10  # classes

    def make_inputs(k, n):
        k1, k2, k3 = jax.random.split(k, 3)
        Y_pred = jax.random.normal(k1, (C, n), dtype=jnp.float32)
        label = jax.random.randint(k2, (n,), 0, C, dtype=jnp.int32)
        labeled = (jax.random.uniform(k3, (n,)) < 0.5).astype(jnp.float32)
        L = jnp.broadcast_to(labeled[None, :], (C, n))  # all-zero / all-one columns
        return Y_pred, label, L

    # (N, tile_n): single full block; ragged + odd block count (exercises the clamped
    # duplicate block on partition 1); even block count; larger odd block count.
    configs = [(64, None), (300, 128), (512, 128), (640, 128)]
    for n, tile in configs:
        key, sub = jax.random.split(key)
        Y_pred, label, L = make_inputs(sub, n)

        loss_full = jax.block_until_ready(
            classification_loss_cross_entropy(Y_pred, label, tile_n=tile))
        loss_semi = jax.block_until_ready(
            classification_loss_cross_entropy(Y_pred, label, L, tile_n=tile))

        ref_full = _reference_loss(Y_pred, label)
        ref_semi = _reference_loss(Y_pred, label, L)

        assert jnp.allclose(loss_full, ref_full, atol=1e-5, rtol=1e-5), (
            n, tile, float(loss_full), float(ref_full))
        assert jnp.allclose(loss_semi, ref_semi, atol=1e-5, rtol=1e-5), (
            n, tile, float(loss_semi), float(ref_semi))

    print("KERNEL_OK")
</pallas_src>

<mosaic_0001>
module attributes {stable_mosaic.version = 11 : i64} {
  func.func @_ce_kernel(%arg0: i32, %arg1: i32, %arg2: memref<10x64xf32, #tpu.memory_space<vmem>>, %arg3: memref<1x64xi32, #tpu.memory_space<vmem>>, %arg4: memref<1x1x1xf32, #tpu.memory_space<vmem>>, %arg5: memref<1x64xf32, #tpu.memory_space<vmem>>) attributes {dimension_semantics = [#tpu.dimension_semantics<parallel>, #tpu.dimension_semantics<arbitrary>], iteration_bounds = array<i64: 1, 1>, scalar_prefetch = 0 : i64, scratch_operands = 1 : i64, tpu.core_type = #tpu.core_type<tc>, window_params = [{transform_indices = @transform_0, window_bounds = array<i64: 10, 64>}, {transform_indices = @transform_1, window_bounds = array<i64: 1, 64>}, {transform_indices = @transform_2, window_bounds = array<i64: 1, 1, 1>}]} {
    %c0_i32 = arith.constant 0 : i32
    %0 = arith.cmpi eq, %arg1, %c0_i32 : i32
    %1 = arith.extui %0 : i1 to i32
    %c0_i32_0 = arith.constant 0 : i32
    %2 = arith.cmpi ne, %1, %c0_i32_0 : i32
    scf.if %2 {
      %cst_15 = arith.constant 0.000000e+00 : f32
      %38 = vector.broadcast %cst_15 : f32 to vector<1x64xf32>
      %c0_16 = arith.constant 0 : index
      %c0_17 = arith.constant 0 : index
      %39 = vector.load %arg5[%c0_16, %c0_17] : memref<1x64xf32, #tpu.memory_space<vmem>>, vector<1x64xf32>
      tpu.vector_store %arg5[%c0_16, %c0_17], %38 {strides = array<i32>} : memref<1x64xf32, #tpu.memory_space<vmem>>, vector<1x64xf32>,
    } else {
    }
    %c0 = arith.constant 0 : index
    %c0_1 = arith.constant 0 : index
    %3 = vector.load %arg2[%c0, %c0_1] : memref<10x64xf32, #tpu.memory_space<vmem>>, vector<10x64xf32>
    %c0_2 = arith.constant 0 : index
    %c0_3 = arith.constant 0 : index
    %4 = vector.load %arg3[%c0_2, %c0_3] : memref<1x64xi32, #tpu.memory_space<vmem>>, vector<1x64xi32>
    %c1_i32 = arith.constant 1 : i32
    %5 = arith.muli %arg0, %c1_i32 : i32
    %6 = arith.addi %5, %arg1 : i32
    %7 = tpu.iota {dimensions = array<i32: 1>} : vector<1x64xi32>
    %c64_i32 = arith.constant 64 : i32
    %8 = arith.muli %6, %c64_i32 : i32
    %9 = vector.broadcast %8 : i32 to vector<1x64xi32>
    %10 = arith.addi %7, %9 : vector<1x64xi32>
    %c64_i32_4 = arith.constant 64 : i32
    %11 = vector.broadcast %c64_i32_4 : i32 to vector<1x64xi32>
    %12 = arith.cmpi slt, %10, %11 : vector<1x64xi32>
    %cst = arith.constant dense<0xFF800000> : vector<64xf32>
    %13 = vector.multi_reduction <maximumf>, %3, %cst [0] : vector<10x64xf32> to vector<64xf32>
    %14 = vector.shape_cast %13 : vector<64xf32> to vector<1x64xf32>
    %15 = vector.broadcast %14 : vector<1x64xf32> to vector<10x64xf32>
    %16 = arith.subf %3, %15 : vector<10x64xf32>
    %17 = math.exp %16 : vector<10x64xf32>
    %cst_5 = arith.constant dense<0.000000e+00> : vector<64xf32>
    %18 = vector.multi_reduction <add>, %17, %cst_5 [0] : vector<10x64xf32> to vector<64xf32>
    %19 = vector.shape_cast %18 : vector<64xf32> to vector<1x64xf32>
    %20 = math.log %19 : vector<1x64xf32>
    %21 = arith.addf %14, %20 : vector<1x64xf32>
    %22 = tpu.iota {dimensions = array<i32: 0>} : vector<10x64xi32>
    %23 = vector.broadcast %4 : vector<1x64xi32> to vector<10x64xi32>
    %24 = arith.cmpi eq, %22, %23 : vector<10x64xi32>
    %cst_6 = arith.constant 0.000000e+00 : f32
    %25 = vector.broadcast %cst_6 : f32 to vector<10x64xf32>
    %26 = arith.select %24, %3, %25 : vector<10x64xi1>, vector<10x64xf32>
    %cst_7 = arith.constant dense<0.000000e+00> : vector<64xf32>
    %27 = vector.multi_reduction <add>, %26, %cst_7 [0] : vector<10x64xf32> to vector<64xf32>
    %28 = vector.shape_cast %27 : vector<64xf32> to vector<1x64xf32>
    %c0_8 = arith.constant 0 : index
    %c0_9 = arith.constant 0 : index
    %29 = vector.load %arg5[%c0_8, %c0_9] : memref<1x64xf32, #tpu.memory_space<vmem>>, vector<1x64xf32>
    %30 = arith.subf %21, %28 : vector<1x64xf32>
    %cst_10 = arith.constant 0.000000e+00 : f32
    %31 = vector.broadcast %cst_10 : f32 to vector<1x64xf32>
    %32 = arith.select %12, %30, %31 : vector<1x64xi1>, vector<1x64xf32>
    %33 = arith.addf %29, %32 : vector<1x64xf32>
    %c0_11 = arith.constant 0 : index
    %c0_12 = arith.constant 0 : index
    %34 = vector.load %arg5[%c0_11, %c0_12] : memref<1x64xf32, #tpu.memory_space<vmem>>, vector<1x64xf32>
    tpu.vector_store %arg5[%c0_11, %c0_12], %33 {strides = array<i32>} : memref<1x64xf32, #tpu.memory_space<vmem>>, vector<1x64xf32>,
    %c0_i32_13 = arith.constant 0 : i32
    %35 = arith.cmpi eq, %arg1, %c0_i32_13 : i32
    %36 = arith.extui %35 : i1 to i32
    %c0_i32_14 = arith.constant 0 : i32
    %37 = arith.cmpi ne, %36, %c0_i32_14 : i32
    scf.if %37 {
      %c0_15 = arith.constant 0 : index
      %c0_16 = arith.constant 0 : index
      %38 = vector.load %arg5[%c0_15, %c0_16] : memref<1x64xf32, #tpu.memory_space<vmem>>, vector<1x64xf32>
      %39 = vector.shape_cast %38 : vector<1x64xf32> to vector<1x1x64xf32>
      %cst_17 = arith.constant dense<0.000000e+00> : vector<1xf32>
      %40 = vector.multi_reduction <add>, %39, %cst_17 [1, 2] : vector<1x1x64xf32> to vector<1xf32>
      %41 = vector.shape_cast %40 : vector<1xf32> to vector<1x1x1xf32>
      %42 = vector.extract %41[0, 0, 0] : f32 from vector<1x1x1xf32>
      %cst_18 = arith.constant 1.562500e-02 : f32
      %43 = arith.mulf %42, %cst_18 : f32
      %44 = vector.broadcast %43 : f32 to vector<1x1x1xf32>
      %c0_19 = arith.constant 0 : index
      %c0_20 = arith.constant 0 : index
      %c0_21 = arith.constant 0 : index
      %45 = vector.load %arg4[%c0_19, %c0_20, %c0_21] : memref<1x1x1xf32, #tpu.memory_space<vmem>>, vector<1x1x1xf32>
      tpu.vector_store %arg4[%c0_19, %c0_20, %c0_21], %44 {strides = array<i32>} : memref<1x1x1xf32, #tpu.memory_space<vmem>>, vector<1x1x1xf32>,
    } else {
    }
    return
  }
  func.func @transform_0(%arg0: i32, %arg1: i32) -> (i32, i32) {
    %c1_i32 = arith.constant 1 : i32
    %0 = arith.muli %arg0, %c1_i32 : i32
    %1 = arith.addi %0, %arg1 : i32
    %c0_i32 = arith.constant 0 : i32
    %2 = arith.minsi %1, %c0_i32 : i32
    %c0_i32_0 = arith.constant 0 : i32
    %c0_i32_1 = arith.constant 0 : i32
    return %c0_i32_0, %2 : i32, i32
  }
  func.func @transform_1(%arg0: i32, %arg1: i32) -> (i32, i32) {
    %c1_i32 = arith.constant 1 : i32
    %0 = arith.muli %arg0, %c1_i32 : i32
    %1 = arith.addi %0, %arg1 : i32
    %c0_i32 = arith.constant 0 : i32
    %2 = arith.minsi %1, %c0_i32 : i32
    %c0_i32_0 = arith.constant 0 : i32
    %c0_i32_1 = arith.constant 0 : i32
    return %c0_i32_0, %2 : i32, i32
  }
  func.func @transform_2(%arg0: i32, %arg1: i32) -> (i32, i32, i32) {
    %c0_i32 = arith.constant 0 : i32
    %c0_i32_0 = arith.constant 0 : i32
    %c0_i32_1 = arith.constant 0 : i32
    return %arg0, %c0_i32, %c0_i32_0 : i32, i32, i32
  }
}

</mosaic_0001>

<llo_original>
// kernel: tpu_custom_call.1
$region0: #{tpu_custom_call.1}
  #allocation0 [shape = 'u32[]', space=smem, size = 0x4, offset = 0x4, fixed_abs, tag = 'smem constant byte address 0x4 - core index']
  #allocation1 [shape = 'u32[144,128]{1,0:T(1,128)}', space=vmem, size = 0x12000, scoped, tag = 'internal scratch']
  #allocation2 [shape = 'f32[1,64]{1,0:T(1,128)}', space=vmem, size = 0x200, scoped, tag = 'scratch operand']
  %s0 = inlined_call_operand.hbm [shape: f32[10,64], index: 0, kind: input, shape index: {}]
  %s1 = inlined_call_operand.vmem [shape: s32[1,64], index: 1, kind: input, shape index: {}]
  %s2 = inlined_call_operand.hbm [shape: f32[1,1,1], index: 2, kind: output, shape index: {}]
  %s3 = sld [smem:[#allocation0]]
  $region30: #{tpu_custom_call.1} parent=0
    _
  %s5 = ssub.s32 1, %s3
  %s6 = scalar_select 0, %s5, %s3
  $region1: #{tpu_custom_call.1} parent=0
    #allocation3 [shape = 'u8[8192]{0}', space=vmem, size = 0x2000, scoped, tag = 'input window, operand 0, single buffered']
    #allocation4 [shape = 's32[1]{0}', space=sflag, size = 0x4, scoped, tag = 'scoped memory for tpu_custom_call.1']
    #allocation5 [shape = 's32[1]{0}', space=sflag, size = 0x4, scoped, tag = 'scoped memory for tpu_custom_call.1']
    #allocation6 [shape = 'u8[512]{0}', space=vmem, size = 0x400, scoped, tag = 'output window, operand 0, single buffered']
    %7 = vsyncpa [#allocation4], 0
    %8 = vsyncpa [#allocation5], 0
    // Predicated region
    $region2: #{tpu_custom_call.1} parent=1 // pred_check
      _
    $region3: #{tpu_custom_call.1} parent=1 // pred_check_branch
      %10 = sbr.rel (0) target = $region5
    $region4: #{tpu_custom_call.1} parent=1 // pred_region
      %s11 = sadd.s32 0, 0
      %p12 = scmp.lt.s32.totalorder %s11, 0
      %s13 = scalar_select %p12, %s11, 0
      %s15 = ssub.s32 256, 256
      %16 = vsyncadd [#allocation4], %s15
      %s17 = smul.addr %s13, 128
      %s18 = scalar_lea.hbm %s0, %s17
      %s19 = sshll.u32 [#allocation3], 4
      %s20 = int_to_ptr.vmem [resolvable:$true] %s19
      %25 = dma.hbm_to_vmem [thread:$0]  %s18, 256, %s20, [#allocation4], 128, 128, 8
    $region5: #{tpu_custom_call.1} parent=1 // pred_fallthru
      _
    // Predicated region
    $region6: #{tpu_custom_call.1} parent=1 // pred_check
      _
    $region7: #{tpu_custom_call.1} parent=1 // pred_check_branch
      %27 = sbr.rel (0) target = $region9
    $region8: #{tpu_custom_call.1} parent=1 // pred_region
      %s28 = sadd.s32 0, 0
      %p29 = scmp.lt.s32.totalorder %s28, 0
      %s30 = scalar_select %p29, %s28, 0
      %p31 = scmp.lt.s32.totalorder %s30, 0
      %s32 = scalar_select %p31, %s30, 0
      %s33 = scalar_lea.vmem %s1, %s32
      %s34 = sadd.s32 0, 0
      %p35 = scmp.lt.s32.totalorder %s34, 0
      %s36 = scalar_select %p35, %s34, 0
    $region9: #{tpu_custom_call.1} parent=1 // pred_fallthru
      _
    // Predicated region
    $region10: #{tpu_custom_call.1} parent=1 // pred_check
      _
    $region11: #{tpu_custom_call.1} parent=1 // pred_check_branch
      %38 = sbr.rel (0) target = $region13
    $region12: #{tpu_custom_call.1} parent=1 // pred_region
      %39 = dma.done [#allocation4], 256
    $region13: #{tpu_custom_call.1} parent=1 // pred_fallthru
      _
    %s40 = sadd.s32 0, 0
    %p41 = scmp.lt.s32.totalorder %s40, 0
    %s42 = scalar_select %p41, %s40, 0
    %p43 = scmp.lt.s32.totalorder %s42, 0
    %s44 = scalar_select %p43, %s42, 0
    %s45 = scalar_lea.vmem %s1, %s44
    %s46 = sadd.s32 0, 0
    %p47 = scmp.lt.s32.totalorder %s46, 0
    %s48 = scalar_select %p47, %s46, 0
    %s49 = sadd.s32 0, 0
    %p50 = scmp.lt.s32.totalorder %s49, 0
    %s51 = scalar_select %p50, %s49, 0
    %p52 = scmp.lt.s32.totalorder %s51, 0
    %s53 = scalar_select %p52, %s51, 0
    %s54 = scalar_lea.vmem %s1, %s53
    %s55 = sadd.s32 0, 0
    %p56 = scmp.lt.s32.totalorder %s55, 0
    %s57 = scalar_select %p56, %s55, 0
    %p58 = scmp.eq.s32.totalorder 0, 0
    // Predicated region
    $region14: #{tpu_custom_call.1} parent=1 // pred_check
      %p59 = pneg %p58
    $region15: #{tpu_custom_call.1} parent=1 // pred_check_branch
      %61 = sbr.rel (%p59) target = $region17
    $region16: #{tpu_custom_call.1} parent=1 // pred_region
      %vm62 = vcmask 516096
      %63 = vst.msk [vmem:[#allocation2] sm:$0x1] %vm62, 0.0
    $region17: #{tpu_custom_call.1} parent=1 // pred_fallthru
      _
    %v64 = vld [vmem:[#allocation3] sm:$0xff]
    %v65 = vld [vmem:[#allocation3 + $0x8] sm:$0x3]
    %v66 = vld [vmem:[%s54] sm:$0x1]
    %s67 = sadd.s32 0, 0
    %v68 = vlaneseq
    %v69 = vand.u32 %v68, 127
    %s70 = smul.u32 %s67, 64
    %v71 = vstv %s70
    %v72 = vadd.s32 %v69, %v71
    %vm73 = vcmp.lt.s32.totalorder %v72, 64
    %vm74 = vcmask 523264
    %v75 = vsel %vm74, %v64, -inf
    %vm76 = vcmask 517120
    %v77 = vsel %vm76, %v65, -inf
    %v78 = vmax.f32 %v75, %v77
    %v79 = vrot.slane %v78, 4
    %v80 = vmax.f32 %v78, %v79
    %v81 = vrot.slane %v80, 2
    %v82 = vmax.f32 %v80, %v81
    %v83 = vrot.slane %v82, 1
    %v84 = vmax.f32 %v82, %v83
    %v85 = vsub.f32 %v64, %v84
    %v86 = vsub.f32 %v65, %v84
    %v87 = vmul.f32 %v85, 1.442695
    %v88 = vpow.pop %v87
    %v89 = vmul.f32 %v86, 1.442695
    %v90 = vpow.pop %v89
    %v91 = vsel %vm74, %v88, 0.0
    %v92 = vsel %vm76, %v90, 0.0
    %v93 = vadd.f32 %v91, %v92
    %v94 = vrot.slane %v93, 4
    %v95 = vadd.f32 %v93, %v94
    %v96 = vrot.slane %v95, 2
    %v97 = vadd.f32 %v95, %v96
    %v98 = vrot.slane %v97, 1
    %v99 = vadd.f32 %v97, %v98
    %v100 = vlog2.pop %v99
    %v101 = vmul.f32 %v100, 0.6931472
    %v102 = vadd.f32 %v84, %v101
    %v103 = vlaneseq
    %v104 = vshrl.u32 %v103, 7
    %v105 = vadd.s32 %v104, 8
    %v106 = vlaneseq
    %v107 = vshrl.u32 %v106, 7
    %v108 = vsub.s32 0, %v107
    %v109 = vrot.slane %v66, %v108
    %vm110 = vcmp.eq.s32.totalorder %v104, %v109
    %vm111 = vcmp.eq.s32.totalorder %v105, %v109
    %v112 = vsel %vm110, %v64, 0.0
    %v113 = vsel %vm111, %v65, 0.0
    %v114 = vsel %vm74, %v112, 0.0
    %v115 = vsel %vm76, %v113, 0.0
    %v116 = vadd.f32 %v114, %v115
    %v117 = vrot.slane %v116, 4
    %v118 = vadd.f32 %v116, %v117
    %v119 = vrot.slane %v118, 2
    %v120 = vadd.f32 %v118, %v119
    %v121 = vrot.slane %v120, 1
    %v122 = vadd.f32 %v120, %v121
    %v123 = vld [vmem:[#allocation2] sm:$0x1]
    %v124 = vsub.f32 %v102, %v122
    %v125 = vsel %vm73, %v124, 0.0
    %v126 = vadd.f32 %v123, %v125
    %vm127 = vcmask 516096
    %128 = vst.msk [vmem:[#allocation2] sm:$0x1] %vm127, %v126
    // Predicated region
    $region18: #{tpu_custom_call.1} parent=1 // pred_check
      %p129 = pneg %p58
    $region19: #{tpu_custom_call.1} parent=1 // pred_check_branch
      %131 = sbr.rel (%p129) target = $region21
    $region20: #{tpu_custom_call.1} parent=1 // pred_region
      %v132 = vld [vmem:[#allocation2] sm:$0x1]
      %v133 = vsel %vm127, %v132, 0.0
      %134 = vadd.xlane.f32.xlu0 %v133
      %v135 = vpop.xlane.xlu0 %134
      %v136 = vrot.slane %v135, 4
      %v137 = vadd.f32 %v135, %v136
      %v138 = vrot.slane %v137, 2
      %v139 = vadd.f32 %v137, %v138
      %v140 = vrot.slane %v139, 1
      %v141 = vadd.f32 %v139, %v140
      %s142 = vtos %v141
      %s143 = smul.f32 %s142, 0.015625
      %v144 = vstv %s143
      %vm145 = vcmask 0
      %146 = vst.msk [vmem:[#allocation6] sm:$0x1] %vm145, %v144
    $region21: #{tpu_custom_call.1} parent=1 // pred_fallthru
      _
    // Predicated region
    $region22: #{tpu_custom_call.1} parent=1 // pred_check
      _
    $region23: #{tpu_custom_call.1} parent=1 // pred_check_branch
      %148 = sbr.rel (0) target = $region25
    $region24: #{tpu_custom_call.1} parent=1 // pred_region
      %s150 = ssub.s32 16, 16
      %151 = vsyncadd [#allocation5], %s150
      %s153 = sshll.u32 [#allocation6], 4
      %s154 = int_to_ptr.vmem [resolvable:$true] %s153
      %156 = dma.vmem_to_hbm [thread:$0]  %s154, 16, %s2, [#allocation5]
    $region25: #{tpu_custom_call.1} parent=1 // pred_fallthru
      _
    // Predicated region
    $region26: #{tpu_custom_call.1} parent=1 // pred_check
      _
    $region27: #{tpu_custom_call.1} parent=1 // pred_check_branch
      %158 = sbr.rel (0) target = $region29
    $region28: #{tpu_custom_call.1} parent=1 // pred_region
      %159 = dma.done [#allocation5], 16
    $region29: #{tpu_custom_call.1} parent=1 // pred_fallthru
      _
    %160 = vsyncpa [#allocation4], 1
    %161 = vsyncpa [#allocation5], 1

</llo_original>
